<compile_context>
chip_gen: v5e
topology: v5e:2x2
jax: 0.10.0
libtpu: 0.0.40
codegen_flags: <defaults>
</compile_context>

<pallas_src>
import functools

import jax
import jax.numpy as jnp
from jax.experimental import pallas as pl
from jax.experimental.pallas import tpu as pltpu

LANE = 128


def _round_up(x, m):
    return ((x + m - 1) // m) * m


# ----------------------------------------------------------------------------------
# Kernel: one fused (actor || critic) MLP on a lane-padded block-diagonal weight set.
#   x:(Bt,D) -> tanh(x@W1+b1):(Bt,HP) -> tanh(.@W2+b2):(Bt,HP) -> .@W3+b3:(Bt,OP)
# Output slab layout along lanes: [0:A) = actor mean, [A:A+1) = value, rest = 0.
# ----------------------------------------------------------------------------------
def fused_actor_critic_kernel(obs_ref,
                              w1_ref, b1_ref,
                              w2_ref, b2_ref,
                              w3_ref, b3_ref,
                              out_ref):
    x = obs_ref[...]
    h = jnp.tanh(jnp.dot(x, w1_ref[...], preferred_element_type=jnp.float32)
                 + b1_ref[...])
    h = jnp.tanh(jnp.dot(h, w2_ref[...], preferred_element_type=jnp.float32)
                 + b2_ref[...])
    out_ref[...] = (jnp.dot(h, w3_ref[...], preferred_element_type=jnp.float32)
                    + b3_ref[...])


# ----------------------------------------------------------------------------------
# One-time parameter packing (done once at init, outside the jitted forward).
# ----------------------------------------------------------------------------------
def pack_params(params):
    D, H = params["aw1"].shape
    A = params["aw3"].shape[1]
    HP = _round_up(2 * H, LANE)          # fused hidden width, lane-padded
    OP = _round_up(A + 1, LANE)          # fused output width, lane-padded

    f32 = jnp.float32
    # Layer 1: both branches consume the same obs -> concatenate along output lanes.
    w1 = jnp.zeros((D, HP), f32)
    w1 = w1.at[:, :H].set(params["aw1"]).at[:, H:2 * H].set(params["cw1"])
    b1 = jnp.zeros((1, HP), f32)
    b1 = b1.at[:, :H].set(params["ab1"]).at[:, H:2 * H].set(params["cb1"])

    # Layer 2: block-diagonal so the branches stay independent.
    w2 = jnp.zeros((HP, HP), f32)
    w2 = w2.at[:H, :H].set(params["aw2"]).at[H:2 * H, H:2 * H].set(params["cw2"])
    b2 = jnp.zeros((1, HP), f32)
    b2 = b2.at[:, :H].set(params["ab2"]).at[:, H:2 * H].set(params["cb2"])

    # Layer 3: actor -> lanes [0, A), critic -> lane A.
    w3 = jnp.zeros((HP, OP), f32)
    w3 = w3.at[:H, :A].set(params["aw3"]).at[H:2 * H, A:A + 1].set(params["cw3"])
    b3 = jnp.zeros((1, OP), f32)
    b3 = b3.at[:, :A].set(params["ab3"]).at[:, A:A + 1].set(params["cb3"])

    # exp(logstd) is obs-independent: hoisted out of the kernel entirely.
    scale = jnp.exp(params["logstd"])    # (1, A)

    return dict(w1=w1, b1=b1, w2=w2, b2=b2, w3=w3, b3=b3, scale=scale)


# ----------------------------------------------------------------------------------
# Forward pass. `done` is only consumed by the recurrent block, which is disabled here.
# TODO(synk): recurrent GRU block and trunk/splitting multi-task variants not implemented.
# ----------------------------------------------------------------------------------
@functools.partial(jax.jit, static_argnames=("action_size",))
def actor_critic_forward(obs, hidden_state, done, packed, action_size):
    B, D = obs.shape
    A = action_size
    HP = packed["w1"].shape[1]
    OP = packed["w3"].shape[1]

    # Batch tiling: one block at small B; <=256-row tiles (parallel axis) at large B.
    Bt = min(256, _round_up(max(B, 1), 8))
    B_pad = _round_up(B, Bt)
    obs_p = obs if B_pad == B else jnp.pad(obs, ((0, B_pad - B), (0, 0)))
    grid = (B_pad // Bt,)

    resident = lambda i: (0, 0)          # weights/biases stay in VMEM across grid steps

    out_slab = pl.pallas_call(
        fused_actor_critic_kernel,
        out_shape=jax.ShapeDtypeStruct((B_pad, OP), jnp.float32),
        grid=grid,
        in_specs=[
            pl.BlockSpec((Bt, D), lambda i: (i, 0)),
            pl.BlockSpec((D, HP), resident),
            pl.BlockSpec((1, HP), resident),
            pl.BlockSpec((HP, HP), resident),
            pl.BlockSpec((1, HP), resident),
            pl.BlockSpec((HP, OP), resident),
            pl.BlockSpec((1, OP), resident),
        ],
        out_specs=pl.BlockSpec((Bt, OP), lambda i: (i, 0)),
        compiler_params=pltpu.CompilerParams(
            dimension_semantics=("parallel",),
            # Explicit budget (well under v7x's 64 MiB physical / 32 MiB scoped default):
            # resident weights + double-buffered obs/output tiles are only a few MiB
            # even at Bt=256.
            vmem_limit_bytes=32 * 1024 * 1024,
        ),
    )(obs_p, packed["w1"], packed["b1"], packed["w2"], packed["b2"],
      packed["w3"], packed["b3"])

    out_slab = out_slab[:B]
    action_mean = out_slab[:, :A]                      # Normal loc
    value_pred = out_slab[:, A:A + 1]                  # critic output
    action_scale = jnp.broadcast_to(packed["scale"], (B, A))  # Normal scale (hoisted exp)

    # Non-recurrent: hidden_state is returned unchanged.
    return value_pred, (action_mean, action_scale), hidden_state


# ----------------------------------------------------------------------------------
# Synthetic params + plain-JAX reference for correctness checking.
# ----------------------------------------------------------------------------------
def init_params(key, input_size, hidden_size, output_size):
    ks = jax.random.split(key, 12)

    def lin(kw, fan_in, fan_out):
        s = 1.0 / jnp.sqrt(jnp.float32(fan_in))
        return jax.random.uniform(kw, (fan_in, fan_out), jnp.float32, -s, s)

    return dict(
        # actor MLP: D -> H -> H -> A
        aw1=lin(ks[0], input_size, hidden_size),
        ab1=jax.random.normal(ks[1], (1, hidden_size), jnp.float32) * 0.01,
        aw2=lin(ks[2], hidden_size, hidden_size),
        ab2=jax.random.normal(ks[3], (1, hidden_size), jnp.float32) * 0.01,
        aw3=lin(ks[4], hidden_size, output_size),
        ab3=jax.random.normal(ks[5], (1, output_size), jnp.float32) * 0.01,
        # critic MLP: D -> H -> H -> 1
        cw1=lin(ks[6], input_size, hidden_size),
        cb1=jax.random.normal(ks[7], (1, hidden_size), jnp.float32) * 0.01,
        cw2=lin(ks[8], hidden_size, hidden_size),
        cb2=jax.random.normal(ks[9], (1, hidden_size), jnp.float32) * 0.01,
        cw3=lin(ks[10], hidden_size, 1),
        cb3=jax.random.normal(ks[11], (1, 1), jnp.float32) * 0.01,
        # AddBias logstd parameter: zeros in the module.
        logstd=jnp.zeros((1, output_size), jnp.float32),
    )


def reference_forward(obs, hidden_state, params):
    h = jnp.tanh(obs @ params["aw1"] + params["ab1"])
    h = jnp.tanh(h @ params["aw2"] + params["ab2"])
    mean = h @ params["aw3"] + params["ab3"]
    c = jnp.tanh(obs @ params["cw1"] + params["cb1"])
    c = jnp.tanh(c @ params["cw2"] + params["cb2"])
    value = c @ params["cw3"] + params["cb3"]
    scale = jnp.exp(jnp.broadcast_to(params["logstd"], mean.shape))
    return value, (mean, scale), hidden_state


if __name__ == "__main__":
    B = 8      # num_processes
    D = 16     # flat Box observation size
    H = 32     # MLP hidden size
    A = 4      # Box action size
    RHS = 32   # recurrent_hidden_size (passthrough)

    key = jax.random.PRNGKey(0)
    k_obs, k_par = jax.random.split(key)
    obs = jax.random.normal(k_obs, (B, D), jnp.float32)
    hidden_state = jnp.zeros((B, RHS), jnp.float32)
    done = jnp.zeros((B, 1), jnp.float32)

    params = init_params(k_par, D, H, A)
    packed = pack_params(params)   # one-time packing, outside the jitted/rolled-out call

    value_pred, (action_mean, action_scale), new_hidden = actor_critic_forward(
        obs, hidden_state, done, packed, A)
    jax.block_until_ready((value_pred, action_mean, action_scale, new_hidden))

    # correctness check against plain-JAX reference
    v_ref, (m_ref, s_ref), h_ref = reference_forward(obs, hidden_state, params)
    assert value_pred.shape == (B, 1)
    assert action_mean.shape == (B, A) and action_scale.shape == (B, A)
    assert jnp.allclose(value_pred, v_ref, atol=1e-5)
    assert jnp.allclose(action_mean, m_ref, atol=1e-5)
    assert jnp.allclose(action_scale, s_ref, atol=1e-5)
    assert jnp.allclose(new_hidden, h_ref)

    print("KERNEL_OK")
</pallas_src>

<mosaic_0001>
module attributes {stable_mosaic.version = 11 : i64} {
  func.func @fused_actor_critic_kernel(%arg0: i32, %arg1: memref<8x16xf32, #tpu.memory_space<vmem>>, %arg2: memref<16x128xf32, #tpu.memory_space<vmem>>, %arg3: memref<1x128xf32, #tpu.memory_space<vmem>>, %arg4: memref<128x128xf32, #tpu.memory_space<vmem>>, %arg5: memref<1x128xf32, #tpu.memory_space<vmem>>, %arg6: memref<128x128xf32, #tpu.memory_space<vmem>>, %arg7: memref<1x128xf32, #tpu.memory_space<vmem>>, %arg8: memref<8x128xf32, #tpu.memory_space<vmem>>) attributes {dimension_semantics = [#tpu.dimension_semantics<parallel>], iteration_bounds = array<i64: 1>, scalar_prefetch = 0 : i64, scratch_operands = 0 : i64, tpu.core_type = #tpu.core_type<tc>, window_params = [{transform_indices = @transform_0, window_bounds = array<i64: 8, 16>}, {pipeline_mode = #tpu.pipeline_mode<synchronous>, transform_indices = @transform_1, window_bounds = array<i64: 16, 128>}, {pipeline_mode = #tpu.pipeline_mode<synchronous>, transform_indices = @transform_2, window_bounds = array<i64: 1, 128>}, {pipeline_mode = #tpu.pipeline_mode<synchronous>, transform_indices = @transform_3, window_bounds = array<i64: 128, 128>}, {pipeline_mode = #tpu.pipeline_mode<synchronous>, transform_indices = @transform_4, window_bounds = array<i64: 1, 128>}, {pipeline_mode = #tpu.pipeline_mode<synchronous>, transform_indices = @transform_5, window_bounds = array<i64: 128, 128>}, {pipeline_mode = #tpu.pipeline_mode<synchronous>, transform_indices = @transform_6, window_bounds = array<i64: 1, 128>}, {transform_indices = @transform_7, window_bounds = array<i64: 8, 128>}]} {
    %c0 = arith.constant 0 : index
    %c0_0 = arith.constant 0 : index
    %0 = vector.load %arg1[%c0, %c0_0] : memref<8x16xf32, #tpu.memory_space<vmem>>, vector<8x16xf32>
    %c0_1 = arith.constant 0 : index
    %c0_2 = arith.constant 0 : index
    %1 = vector.load %arg2[%c0_1, %c0_2] : memref<16x128xf32, #tpu.memory_space<vmem>>, vector<16x128xf32>
    %cst = arith.constant dense<0.000000e+00> : vector<8x128xf32>
    %2 = tpu.matmul %0, %1, %cst {dimension_numbers = #tpu.dot_dimension_numbers<[1], [0], [0], [1], [0, 0, 1, 1], [], []>} : vector<8x16xf32>, vector<16x128xf32>, vector<8x128xf32> -> vector<8x128xf32>
    %c0_3 = arith.constant 0 : index
    %c0_4 = arith.constant 0 : index
    %3 = vector.load %arg3[%c0_3, %c0_4] : memref<1x128xf32, #tpu.memory_space<vmem>>, vector<1x128xf32>
    %4 = vector.broadcast %3 : vector<1x128xf32> to vector<8x128xf32>
    %5 = arith.addf %2, %4 : vector<8x128xf32>
    %6 = math.tanh %5 : vector<8x128xf32>
    %c0_5 = arith.constant 0 : index
    %c0_6 = arith.constant 0 : index
    %7 = vector.load %arg4[%c0_5, %c0_6] : memref<128x128xf32, #tpu.memory_space<vmem>>, vector<128x128xf32>
    %cst_7 = arith.constant dense<0.000000e+00> : vector<8x128xf32>
    %8 = tpu.matmul %6, %7, %cst_7 {dimension_numbers = #tpu.dot_dimension_numbers<[1], [0], [0], [1], [0, 0, 1, 1], [], []>} : vector<8x128xf32>, vector<128x128xf32>, vector<8x128xf32> -> vector<8x128xf32>
    %c0_8 = arith.constant 0 : index
    %c0_9 = arith.constant 0 : index
    %9 = vector.load %arg5[%c0_8, %c0_9] : memref<1x128xf32, #tpu.memory_space<vmem>>, vector<1x128xf32>
    %10 = vector.broadcast %9 : vector<1x128xf32> to vector<8x128xf32>
    %11 = arith.addf %8, %10 : vector<8x128xf32>
    %12 = math.tanh %11 : vector<8x128xf32>
    %c0_10 = arith.constant 0 : index
    %c0_11 = arith.constant 0 : index
    %13 = vector.load %arg6[%c0_10, %c0_11] : memref<128x128xf32, #tpu.memory_space<vmem>>, vector<128x128xf32>
    %cst_12 = arith.constant dense<0.000000e+00> : vector<8x128xf32>
    %14 = tpu.matmul %12, %13, %cst_12 {dimension_numbers = #tpu.dot_dimension_numbers<[1], [0], [0], [1], [0, 0, 1, 1], [], []>} : vector<8x128xf32>, vector<128x128xf32>, vector<8x128xf32> -> vector<8x128xf32>
    %c0_13 = arith.constant 0 : index
    %c0_14 = arith.constant 0 : index
    %15 = vector.load %arg7[%c0_13, %c0_14] : memref<1x128xf32, #tpu.memory_space<vmem>>, vector<1x128xf32>
    %16 = vector.broadcast %15 : vector<1x128xf32> to vector<8x128xf32>
    %17 = arith.addf %14, %16 : vector<8x128xf32>
    %c0_15 = arith.constant 0 : index
    %c0_16 = arith.constant 0 : index
    %18 = vector.load %arg8[%c0_15, %c0_16] : memref<8x128xf32, #tpu.memory_space<vmem>>, vector<8x128xf32>
    tpu.vector_store %arg8[%c0_15, %c0_16], %17 {strides = array<i32>} : memref<8x128xf32, #tpu.memory_space<vmem>>, vector<8x128xf32>,
    return
  }
  func.func @transform_0(%arg0: i32) -> (i32, i32) {
    %c0_i32 = arith.constant 0 : i32
    %c0_i32_0 = arith.constant 0 : i32
    return %arg0, %c0_i32 : i32, i32
  }
  func.func @transform_1(%arg0: i32) -> (i32, i32) {
    %c0_i32 = arith.constant 0 : i32
    %c0_i32_0 = arith.constant 0 : i32
    %c0_i32_1 = arith.constant 0 : i32
    return %c0_i32, %c0_i32_0 : i32, i32
  }
  func.func @transform_2(%arg0: i32) -> (i32, i32) {
    %c0_i32 = arith.constant 0 : i32
    %c0_i32_0 = arith.constant 0 : i32
    %c0_i32_1 = arith.constant 0 : i32
    return %c0_i32, %c0_i32_0 : i32, i32
  }
  func.func @transform_3(%arg0: i32) -> (i32, i32) {
    %c0_i32 = arith.constant 0 : i32
    %c0_i32_0 = arith.constant 0 : i32
    %c0_i32_1 = arith.constant 0 : i32
    return %c0_i32, %c0_i32_0 : i32, i32
  }
  func.func @transform_4(%arg0: i32) -> (i32, i32) {
    %c0_i32 = arith.constant 0 : i32
    %c0_i32_0 = arith.constant 0 : i32
    %c0_i32_1 = arith.constant 0 : i32
    return %c0_i32, %c0_i32_0 : i32, i32
  }
  func.func @transform_5(%arg0: i32) -> (i32, i32) {
    %c0_i32 = arith.constant 0 : i32
    %c0_i32_0 = arith.constant 0 : i32
    %c0_i32_1 = arith.constant 0 : i32
    return %c0_i32, %c0_i32_0 : i32, i32
  }
  func.func @transform_6(%arg0: i32) -> (i32, i32) {
    %c0_i32 = arith.constant 0 : i32
    %c0_i32_0 = arith.constant 0 : i32
    %c0_i32_1 = arith.constant 0 : i32
    return %c0_i32, %c0_i32_0 : i32, i32
  }
  func.func @transform_7(%arg0: i32) -> (i32, i32) {
    %c0_i32 = arith.constant 0 : i32
    %c0_i32_0 = arith.constant 0 : i32
    return %arg0, %c0_i32 : i32, i32
  }
}

</mosaic_0001>

<llo_original>
// kernel: actor_critic_forward.1
$region0: #{actor_critic_forward.1}
  #allocation0 [shape = 'u32[]', space=smem, size = 0x4, offset = 0x4, fixed_abs, tag = 'smem constant byte address 0x4 - core index']
  #allocation1 [shape = 'u32[72,128]{1,0:T(1,128)}', space=vmem, size = 0x9000, scoped, tag = 'internal scratch']
  %s0 = inlined_call_operand.hbm [shape: f32[8,16], index: 0, kind: input, shape index: {}]
  %s1 = inlined_call_operand.hbm [shape: f32[16,128], index: 1, kind: input, shape index: {}]
  %s2 = inlined_call_operand.vmem [shape: f32[1,128], index: 2, kind: input, shape index: {}]
  %s3 = inlined_call_operand.hbm [shape: f32[128,128], index: 3, kind: input, shape index: {}]
  %s4 = inlined_call_operand.vmem [shape: f32[1,128], index: 4, kind: input, shape index: {}]
  %s5 = inlined_call_operand.hbm [shape: f32[128,128], index: 5, kind: input, shape index: {}]
  %s6 = inlined_call_operand.vmem [shape: f32[1,128], index: 6, kind: input, shape index: {}]
  %s7 = inlined_call_operand.vmem [shape: f32[8,128], index: 7, kind: output, shape index: {}]
  %s8 = sld [smem:[#allocation0]]
  $region54: #{actor_critic_forward.1} parent=0
    _
  %s10 = ssub.s32 1, %s8
  %s11 = scalar_select 0, %s10, %s8
  $region1: #{actor_critic_forward.1} parent=0
    #allocation2 [shape = 'u8[4096]{0}', space=vmem, size = 0x1000, scoped, tag = 'input window, operand 0, single buffered']
    #allocation3 [shape = 's32[1]{0}', space=sflag, size = 0x4, scoped, tag = 'scoped memory for actor_critic_forward.1']
    #allocation4 [shape = 'u8[8192]{0}', space=vmem, size = 0x2000, scoped, tag = 'input window, operand 1, single buffered']
    #allocation5 [shape = 's32[1]{0}', space=sflag, size = 0x4, scoped, tag = 'scoped memory for actor_critic_forward.1']
    #allocation6 [shape = 'u8[65536]{0}', space=vmem, size = 0x10000, scoped, tag = 'input window, operand 3, single buffered']
    #allocation7 [shape = 'u8[65536]{0}', space=vmem, size = 0x10000, scoped, tag = 'input window, operand 5, single buffered']
    #allocation8 [shape = 's32[1]{0}', space=sflag, size = 0x4, scoped, tag = 'scoped memory for actor_critic_forward.1']
    %12 = vsyncpa [#allocation3], 0
    %13 = vsyncpa [#allocation5], 0
    %14 = vsyncpa [#allocation8], 0
    // Predicated region
    $region2: #{actor_critic_forward.1} parent=1 // pred_check
      _
    $region3: #{actor_critic_forward.1} parent=1 // pred_check_branch
      %16 = sbr.rel (0) target = $region5
    $region4: #{actor_critic_forward.1} parent=1 // pred_region
      %18 = vsyncadd [#allocation3], 0
      %s20 = sshll.u32 %s0, 4
      %s21 = int_to_ptr.hbm [resolvable:$true] %s20
      %s22 = sshll.u32 [#allocation2], 4
      %s23 = int_to_ptr.vmem [resolvable:$true] %s22
      %25 = dma.hbm_to_vmem [thread:$0]  %s21, 128, %s23, [#allocation3]
    $region5: #{actor_critic_forward.1} parent=1 // pred_fallthru
      _
    // Predicated region
    $region6: #{actor_critic_forward.1} parent=1 // pred_check
      _
    $region7: #{actor_critic_forward.1} parent=1 // pred_check_branch
      %27 = sbr.rel (0) target = $region9
    $region8: #{actor_critic_forward.1} parent=1 // pred_region
      %29 = vsyncadd [#allocation5], 0
      %s30 = sshll.u32 %s1, 4
      %s31 = int_to_ptr.hbm [resolvable:$true] %s30
      %s32 = sshll.u32 [#allocation4], 4
      %s33 = int_to_ptr.vmem [resolvable:$true] %s32
      %38 = dma.hbm_to_vmem [thread:$0]  %s31, 256, %s33, [#allocation5], 128, 128, 8
    $region9: #{actor_critic_forward.1} parent=1 // pred_fallthru
      _
    // Predicated region
    $region10: #{actor_critic_forward.1} parent=1 // pred_check
      _
    $region11: #{actor_critic_forward.1} parent=1 // pred_check_branch
      %40 = sbr.rel (0) target = $region13
    $region12: #{actor_critic_forward.1} parent=1 // pred_region
      _
    $region13: #{actor_critic_forward.1} parent=1 // pred_fallthru
      _
    // Predicated region
    $region14: #{actor_critic_forward.1} parent=1 // pred_check
      _
    $region15: #{actor_critic_forward.1} parent=1 // pred_check_branch
      %42 = sbr.rel (0) target = $region17
    $region16: #{actor_critic_forward.1} parent=1 // pred_region
      %44 = vsyncadd [#allocation5], 0
      %s45 = sshll.u32 %s3, 4
      %s46 = int_to_ptr.hbm [resolvable:$true] %s45
      %s47 = sshll.u32 [#allocation6], 4
      %s48 = int_to_ptr.vmem [resolvable:$true] %s47
      %53 = dma.hbm_to_vmem [thread:$0]  %s46, 2048, %s48, [#allocation5], 128, 128, 8
    $region17: #{actor_critic_forward.1} parent=1 // pred_fallthru
      _
    // Predicated region
    $region18: #{actor_critic_forward.1} parent=1 // pred_check
      _
    $region19: #{actor_critic_forward.1} parent=1 // pred_check_branch
      %55 = sbr.rel (0) target = $region21
    $region20: #{actor_critic_forward.1} parent=1 // pred_region
      _
    $region21: #{actor_critic_forward.1} parent=1 // pred_fallthru
      _
    // Predicated region
    $region22: #{actor_critic_forward.1} parent=1 // pred_check
      _
    $region23: #{actor_critic_forward.1} parent=1 // pred_check_branch
      %57 = sbr.rel (0) target = $region25
    $region24: #{actor_critic_forward.1} parent=1 // pred_region
      %59 = vsyncadd [#allocation8], 0
      %s60 = sshll.u32 %s5, 4
      %s61 = int_to_ptr.hbm [resolvable:$true] %s60
      %s62 = sshll.u32 [#allocation7], 4
      %s63 = int_to_ptr.vmem [resolvable:$true] %s62
      %68 = dma.hbm_to_vmem [thread:$0]  %s61, 2048, %s63, [#allocation8], 128, 128, 8
    $region25: #{actor_critic_forward.1} parent=1 // pred_fallthru
      _
    // Predicated region
    $region26: #{actor_critic_forward.1} parent=1 // pred_check
      _
    $region27: #{actor_critic_forward.1} parent=1 // pred_check_branch
      %70 = sbr.rel (0) target = $region29
    $region28: #{actor_critic_forward.1} parent=1 // pred_region
      _
    $region29: #{actor_critic_forward.1} parent=1 // pred_fallthru
      _
    // Predicated region
    $region30: #{actor_critic_forward.1} parent=1 // pred_check
      _
    $region31: #{actor_critic_forward.1} parent=1 // pred_check_branch
      %72 = sbr.rel (0) target = $region33
    $region32: #{actor_critic_forward.1} parent=1 // pred_region
      %74 = dma.done [#allocation3], 128
    $region33: #{actor_critic_forward.1} parent=1 // pred_fallthru
      _
    // Predicated region
    $region34: #{actor_critic_forward.1} parent=1 // pred_check
      _
    $region35: #{actor_critic_forward.1} parent=1 // pred_check_branch
      %76 = sbr.rel (0) target = $region37
    $region36: #{actor_critic_forward.1} parent=1 // pred_region
      %78 = dma.done [#allocation5], 256
    $region37: #{actor_critic_forward.1} parent=1 // pred_fallthru
      _
    // Predicated region
    $region38: #{actor_critic_forward.1} parent=1 // pred_check
      _
    $region39: #{actor_critic_forward.1} parent=1 // pred_check_branch
      %80 = sbr.rel (0) target = $region41
    $region40: #{actor_critic_forward.1} parent=1 // pred_region
      %82 = dma.done [#allocation5], 2048
    $region41: #{actor_critic_forward.1} parent=1 // pred_fallthru
      _
    // Predicated region
    $region42: #{actor_critic_forward.1} parent=1 // pred_check
      _
    $region43: #{actor_critic_forward.1} parent=1 // pred_check_branch
      %84 = sbr.rel (0) target = $region45
    $region44: #{actor_critic_forward.1} parent=1 // pred_region
      %86 = dma.done [#allocation8], 2048
    $region45: #{actor_critic_forward.1} parent=1 // pred_fallthru
      _
    %v87 = vld [vmem:[#allocation2] sm:$0xff]
    %v88 = vld [vmem:[#allocation4] sm:$0xff]
    %v89 = vld [vmem:[#allocation4 + $0x8] sm:$0xff]
    %v90 = vld [vmem:[%s2] sm:$0x1]
    %v92 = vperm.slane %v90, 0
    %vm94 = vcmask 130048
    %v96 = vsel %vm94, %v87, 0
    %98 = vmatpush.msra.mxu0 0.0
    %99 = vmatpush.msra.mxu0 0.0
    %100 = vmatpush.msra.mxu0 0.0
    %101 = vmatpush.msra.mxu0 0.0
    %102 = vmatpush.msra.mxu0 0.0
    %103 = vmatpush.msra.mxu0 0.0
    %104 = vmatpush.msra.mxu0 0.0
    %105 = vmatpush.msra.mxu0 0.0
    %106 = vmatpush.msra.mxu0 0.0
    %107 = vmatpush.msra.mxu0 0.0
    %108 = vmatpush.msra.mxu0 0.0
    %109 = vmatpush.msra.mxu0 0.0
    %110 = vmatpush.msra.mxu0 0.0
    %111 = vmatpush.msra.mxu0 0.0
    %112 = vmatpush.msra.mxu0 %v89
    %113 = vmatpush.msra.mxu0 %v88
    %114 = vmatmul.f32.gmra.mxu0 %v96
    %v115 = vpop.f32.mrf.mxu0
    %v116 = vadd.f32 %v92, %v115
    %117 = vdwg.mxu0
    %v118 = vtanh.pop %v116
    %v119 = vld [vmem:[#allocation6] sm:$0xff]
    %v120 = vld [vmem:[#allocation6 + $0x8] sm:$0xff]
    %v121 = vld [vmem:[#allocation6 + $0x10] sm:$0xff]
    %v122 = vld [vmem:[#allocation6 + $0x18] sm:$0xff]
    %v123 = vld [vmem:[#allocation6 + $0x20] sm:$0xff]
    %v124 = vld [vmem:[#allocation6 + $0x28] sm:$0xff]
    %v125 = vld [vmem:[#allocation6 + $0x30] sm:$0xff]
    %v126 = vld [vmem:[#allocation6 + $0x38] sm:$0xff]
    %v127 = vld [vmem:[#allocation6 + $0x40] sm:$0xff]
    %v128 = vld [vmem:[#allocation6 + $0x48] sm:$0xff]
    %v129 = vld [vmem:[#allocation6 + $0x50] sm:$0xff]
    %v130 = vld [vmem:[#allocation6 + $0x58] sm:$0xff]
    %v131 = vld [vmem:[#allocation6 + $0x60] sm:$0xff]
    %v132 = vld [vmem:[#allocation6 + $0x68] sm:$0xff]
    %v133 = vld [vmem:[#allocation6 + $0x70] sm:$0xff]
    %v134 = vld [vmem:[#allocation6 + $0x78] sm:$0xff]
    %v135 = vld [vmem:[%s4] sm:$0x1]
    %v137 = vperm.slane %v135, 0
    %139 = vmatpush.msra.mxu0 %v134
    %140 = vmatpush.msra.mxu0 %v133
    %141 = vmatpush.msra.mxu0 %v132
    %142 = vmatpush.msra.mxu0 %v131
    %143 = vmatpush.msra.mxu0 %v130
    %144 = vmatpush.msra.mxu0 %v129
    %145 = vmatpush.msra.mxu0 %v128
    %146 = vmatpush.msra.mxu0 %v127
    %147 = vmatpush.msra.mxu0 %v126
    %148 = vmatpush.msra.mxu0 %v125
    %149 = vmatpush.msra.mxu0 %v124
    %150 = vmatpush.msra.mxu0 %v123
    %151 = vmatpush.msra.mxu0 %v122
    %152 = vmatpush.msra.mxu0 %v121
    %153 = vmatpush.msra.mxu0 %v120
    %154 = vmatpush.msra.mxu0 %v119
    %155 = vmatmul.f32.gmra.mxu0 %v118
    %v156 = vpop.f32.mrf.mxu0
    %v157 = vadd.f32 %v137, %v156
    %158 = vdwg.mxu0
    %v159 = vtanh.pop %v157
    %v160 = vld [vmem:[#allocation7] sm:$0xff]
    %v161 = vld [vmem:[#allocation7 + $0x8] sm:$0xff]
    %v162 = vld [vmem:[#allocation7 + $0x10] sm:$0xff]
    %v163 = vld [vmem:[#allocation7 + $0x18] sm:$0xff]
    %v164 = vld [vmem:[#allocation7 + $0x20] sm:$0xff]
    %v165 = vld [vmem:[#allocation7 + $0x28] sm:$0xff]
    %v166 = vld [vmem:[#allocation7 + $0x30] sm:$0xff]
    %v167 = vld [vmem:[#allocation7 + $0x38] sm:$0xff]
    %v168 = vld [vmem:[#allocation7 + $0x40] sm:$0xff]
    %v169 = vld [vmem:[#allocation7 + $0x48] sm:$0xff]
    %v170 = vld [vmem:[#allocation7 + $0x50] sm:$0xff]
    %v171 = vld [vmem:[#allocation7 + $0x58] sm:$0xff]
    %v172 = vld [vmem:[#allocation7 + $0x60] sm:$0xff]
    %v173 = vld [vmem:[#allocation7 + $0x68] sm:$0xff]
    %v174 = vld [vmem:[#allocation7 + $0x70] sm:$0xff]
    %v175 = vld [vmem:[#allocation7 + $0x78] sm:$0xff]
    %v176 = vld [vmem:[%s6] sm:$0x1]
    %v178 = vperm.slane %v176, 0
    %180 = vmatpush.msra.mxu0 %v175
    %181 = vmatpush.msra.mxu0 %v174
    %182 = vmatpush.msra.mxu0 %v173
    %183 = vmatpush.msra.mxu0 %v172
    %184 = vmatpush.msra.mxu0 %v171
    %185 = vmatpush.msra.mxu0 %v170
    %186 = vmatpush.msra.mxu0 %v169
    %187 = vmatpush.msra.mxu0 %v168
    %188 = vmatpush.msra.mxu0 %v167
    %189 = vmatpush.msra.mxu0 %v166
    %190 = vmatpush.msra.mxu0 %v165
    %191 = vmatpush.msra.mxu0 %v164
    %192 = vmatpush.msra.mxu0 %v163
    %193 = vmatpush.msra.mxu0 %v162
    %194 = vmatpush.msra.mxu0 %v161
    %195 = vmatpush.msra.mxu0 %v160
    %196 = vmatmul.f32.gmra.mxu0 %v159
    %v197 = vpop.f32.mrf.mxu0
    %v198 = vadd.f32 %v178, %v197
    %199 = vdwg.mxu0
    %200 = vst [vmem:[%s7] sm:$0xff] %v198
    // Predicated region
    $region46: #{actor_critic_forward.1} parent=1 // pred_check
      _
    $region47: #{actor_critic_forward.1} parent=1 // pred_check_branch
      %202 = sbr.rel (0) target = $region49
    $region48: #{actor_critic_forward.1} parent=1 // pred_region
      _
    $region49: #{actor_critic_forward.1} parent=1 // pred_fallthru
      _
    // Predicated region
    $region50: #{actor_critic_forward.1} parent=1 // pred_check
      _
    $region51: #{actor_critic_forward.1} parent=1 // pred_check_branch
      %204 = sbr.rel (0) target = $region53
    $region52: #{actor_critic_forward.1} parent=1 // pred_region
      _
    $region53: #{actor_critic_forward.1} parent=1 // pred_fallthru
      _
    %205 = vsyncpa [#allocation3], 1
    %206 = vsyncpa [#allocation5], 1
    %207 = vsyncpa [#allocation8], 1

</llo_original>
